<compile_context>
chip_gen: v7x
topology: tpu7x:2x2x1
jax: 0.10.0
libtpu: 0.0.40
codegen_flags: <defaults>
</compile_context>

<pallas_src>
import functools

import jax
import jax.numpy as jnp
from jax.experimental import pallas as pl
from jax.experimental.pallas import tpu as pltpu

LN_EPS = 1e-5  # PyTorch nn.LayerNorm default


def _round_up(n, m):
    return (n + m - 1) // m * m


def _cdiv(a, b):
    return -(-a // b)


def _ln_relu(h, gamma, beta, n_real):
    """LayerNorm over the first `n_real` lanes of the last dim, then ReLU.

    Padded lanes (>= n_real) of h are exactly zero on input and have
    gamma=beta=0, so they stay zero on output.  Their contribution to the
    variance sum is exactly n_pad * mu^2, which we subtract as a per-row
    scalar instead of using a full-width lane mask/select.
    """
    fpad = h.shape[-1]
    inv_n = 1.0 / float(n_real)
    n_pad = float(fpad - n_real)

    mu = jnp.sum(h, axis=-1, keepdims=True) * inv_n        # true-count mean
    diff = h - mu
    sq = jnp.sum(diff * diff, axis=-1, keepdims=True)
    if n_pad > 0.0:
        # padded lanes contribute (-mu)^2 each; remove them (clamp guards the
        # tiny negative that fp cancellation could produce).
        sq = jnp.maximum(sq - n_pad * (mu * mu), 0.0)
    var = sq * inv_n

    scale = gamma * jax.lax.rsqrt(var + LN_EPS)             # rsqrt -> EUP slot
    return jnp.maximum(h * scale + (beta - mu * scale), 0.0)


def _policy_repr_kernel(x_ref,
                        w1_ref, b1_ref, g1_ref, be1_ref,
                        w2_ref, b2_ref, g2_ref, be2_ref,
                        w3_ref, b3_ref,
                        out_ref, *, n1, n2):
    x = x_ref[...]                        # [tile_b, input_size]
    mx_dtype = w1_ref.dtype               # matmul operand dtype (f32 or bf16)

    # fc1 -> ln1 -> relu
    h1 = jnp.dot(x, w1_ref[...], preferred_element_type=jnp.float32) + b1_ref[...]
    h1 = _ln_relu(h1, g1_ref[...], be1_ref[...], n1)

    # fc2 -> ln2 -> relu
    h2 = jnp.dot(h1.astype(mx_dtype), w2_ref[...],
                 preferred_element_type=jnp.float32) + b2_ref[...]
    h2 = _ln_relu(h2, g2_ref[...], be2_ref[...], n2)

    # fc3: output kept at the true embedding width (no write amplification)
    out = jnp.dot(h2.astype(mx_dtype), w3_ref[...],
                  preferred_element_type=jnp.float32) + b3_ref[...]
    out_ref[...] = out.astype(out_ref.dtype)


def prepare_params(params, use_bf16=False):
    """Pad hidden feature dims to 128 lanes and cast matmul operands once,
    OUTSIDE the per-call jitted path.  Output feature dim is NOT padded."""
    w1, b1, g1, be1, w2, b2, g2, be2, w3, b3 = params
    input_size, fc1 = w1.shape
    fc2 = w2.shape[1]
    F1, F2 = _round_up(fc1, 128), _round_up(fc2, 128)
    mx = jnp.bfloat16 if use_bf16 else jnp.float32

    def pad_mat(w, rows, cols):
        return jnp.pad(w, ((0, rows - w.shape[0]), (0, cols - w.shape[1])))

    def pad_row(v, cols):
        return jnp.pad(v, ((0, 0), (0, cols - v.shape[1])))

    arrays = (
        pad_mat(w1, input_size, F1).astype(mx),
        pad_row(b1, F1), pad_row(g1, F1), pad_row(be1, F1),
        pad_mat(w2, F1, F2).astype(mx),
        pad_row(b2, F2), pad_row(g2, F2), pad_row(be2, F2),
        pad_mat(w3, F2, w3.shape[1]).astype(mx),   # rows padded, columns NOT
        b3,                                         # true-width bias (f32)
    )
    return arrays, (fc1, fc2)


@functools.partial(jax.jit, static_argnames=("n1", "n2", "tile_b"))
def _policy_repr_forward(x, w1, b1, g1, be1, w2, b2, g2, be2, w3, b3,
                         *, n1, n2, tile_b):
    input_size = w1.shape[0]
    emb = w3.shape[1]
    mx_dtype = w1.dtype

    # --- flatten like x.view(-1, input_size) ---
    x2 = x.reshape(-1, input_size).astype(mx_dtype)
    B = x2.shape[0]

    # --- balanced batch tiling (padding capped at < one sublane group) ---
    sub = 16 if mx_dtype == jnp.bfloat16 else 8      # bf16 sublane packing
    num_tiles = max(1, _cdiv(B, int(tile_b)))
    if B > 256 and num_tiles < 2:
        num_tiles = 2                                # v7x: feed both TensorCores
    tile_eff = _round_up(_cdiv(B, num_tiles), sub)
    B_pad = num_tiles * tile_eff
    if B_pad != B:
        x2 = jnp.pad(x2, ((0, B_pad - B), (0, 0)))

    # Small params: whole-array resident in VMEM (no per-step double-buffering).
    vmem_spec = pl.BlockSpec(memory_space=pltpu.MemorySpace.VMEM)

    out = pl.pallas_call(
        functools.partial(_policy_repr_kernel, n1=n1, n2=n2),
        out_shape=jax.ShapeDtypeStruct((B_pad, emb), jnp.float32),
        grid_spec=pltpu.PrefetchScalarGridSpec(
            num_scalar_prefetch=0,
            grid=(num_tiles,),
            in_specs=[
                pl.BlockSpec((tile_eff, input_size), lambda i: (i, 0)),  # x tile
                vmem_spec,   # w1  [in, F1]
                vmem_spec,   # b1  [1, F1]
                vmem_spec,   # ln1 gamma
                vmem_spec,   # ln1 beta
                vmem_spec,   # w2  [F1, F2]
                vmem_spec,   # b2
                vmem_spec,   # ln2 gamma
                vmem_spec,   # ln2 beta
                vmem_spec,   # w3  [F2, emb]
                vmem_spec,   # b3  [1, emb]
            ],
            out_specs=pl.BlockSpec((tile_eff, emb), lambda i: (i, 0)),
        ),
        compiler_params=pltpu.CompilerParams(
            dimension_semantics=("parallel",)),
    )(x2, w1, b1, g1, be1, w2, b2, g2, be2, w3, b3)

    if B_pad != B:
        out = out[:B]
    return out


def policy_representation(x, prepared, *, tile_b=1024):
    """Forward pass of Policy_Representation on pre-padded params
    (see prepare_params).  x: any shape; flattened to (-1, input_size)."""
    arrays, (fc1, fc2) = prepared
    return _policy_repr_forward(x, *arrays, n1=fc1, n2=fc2, tile_b=tile_b)


def init_params(key, input_size, embedding_size, fc1_units=36, fc2_units=36):
    """Deterministic init mimicking PyTorch nn.Linear (uniform +/- 1/sqrt(fan_in)).
    Weights are returned already transposed to [in, out] for the kernel."""
    ks = jax.random.split(key, 6)

    def linear(kw, kb, fan_in, fan_out):
        bound = 1.0 / jnp.sqrt(fan_in)
        w = jax.random.uniform(kw, (fan_in, fan_out), jnp.float32, -bound, bound)
        b = jax.random.uniform(kb, (1, fan_out), jnp.float32, -bound, bound)
        return w, b

    w1, b1 = linear(ks[0], ks[1], input_size, fc1_units)
    w2, b2 = linear(ks[2], ks[3], fc1_units, fc2_units)
    w3, b3 = linear(ks[4], ks[5], fc2_units, embedding_size)
    g1 = jnp.ones((1, fc1_units), jnp.float32)
    be1 = jnp.zeros((1, fc1_units), jnp.float32)
    g2 = jnp.ones((1, fc2_units), jnp.float32)
    be2 = jnp.zeros((1, fc2_units), jnp.float32)
    return (w1, b1, g1, be1, w2, b2, g2, be2, w3, b3)


def reference(x, params):
    w1, b1, g1, be1, w2, b2, g2, be2, w3, b3 = params

    def ln(h, g, b):
        mu = h.mean(-1, keepdims=True)
        var = ((h - mu) ** 2).mean(-1, keepdims=True)
        return (h - mu) / jnp.sqrt(var + LN_EPS) * g + b

    h = jax.nn.relu(ln(x @ w1 + b1, g1, be1))
    h = jax.nn.relu(ln(h @ w2 + b2, g2, be2))
    return h @ w3 + b3


if __name__ == "__main__":
    key = jax.random.PRNGKey(0)
    kx, kp = jax.random.split(key)

    input_size = 16
    embedding_size = 8
    B = 16  # total rows after x.view(-1, input_size)

    x = jax.random.normal(kx, (B, input_size), jnp.float32)
    params = init_params(kp, input_size, embedding_size)
    ref = reference(x.reshape(-1, input_size), params)

    # f32 path (all generations)
    prepared = prepare_params(params)
    out = jax.block_until_ready(policy_representation(x, prepared))
    assert out.shape == (B, embedding_size)
    assert jnp.allclose(out, ref, atol=1e-4, rtol=1e-4), (
        float(jnp.max(jnp.abs(out - ref))))

    # Ragged batch (not a multiple of the sublane group): pad-and-slice path.
    out_r = jax.block_until_ready(policy_representation(x[:11], prepared))
    assert out_r.shape == (11, embedding_size)
    assert jnp.allclose(out_r, ref[:11], atol=1e-4, rtol=1e-4)

    # bf16 matmul-operand path (valid on v5e/v6e/v7x; LN & accumulation stay
    # f32).  Note: x itself is cast to bf16, so first-layer numerics diverge
    # slightly from the f32 reference (hence the looser tolerance).
    prepared_bf16 = prepare_params(params, use_bf16=True)
    out_bf = jax.block_until_ready(policy_representation(x, prepared_bf16))
    assert out_bf.shape == (B, embedding_size)
    assert jnp.allclose(out_bf, ref, atol=1e-1, rtol=1e-1)

    print("KERNEL_OK")
</pallas_src>

<mosaic_0001>
module attributes {stable_mosaic.version = 11 : i64} {
  func.func @_policy_repr_kernel(%arg0: i32, %arg1: memref<16x16xf32, #tpu.memory_space<vmem>>, %arg2: memref<16x128xf32, #tpu.memory_space<vmem>>, %arg3: memref<1x128xf32, #tpu.memory_space<vmem>>, %arg4: memref<1x128xf32, #tpu.memory_space<vmem>>, %arg5: memref<1x128xf32, #tpu.memory_space<vmem>>, %arg6: memref<128x128xf32, #tpu.memory_space<vmem>>, %arg7: memref<1x128xf32, #tpu.memory_space<vmem>>, %arg8: memref<1x128xf32, #tpu.memory_space<vmem>>, %arg9: memref<1x128xf32, #tpu.memory_space<vmem>>, %arg10: memref<128x8xf32, #tpu.memory_space<vmem>>, %arg11: memref<1x8xf32, #tpu.memory_space<vmem>>, %arg12: memref<16x8xf32, #tpu.memory_space<vmem>>) attributes {dimension_semantics = [#tpu.dimension_semantics<parallel>], iteration_bounds = array<i64: 1>, scalar_prefetch = 0 : i64, scratch_operands = 0 : i64, tpu.core_type = #tpu.core_type<tc>, window_params = [{transform_indices = @transform_0, window_bounds = array<i64: 16, 16>}, {pipeline_mode = #tpu.pipeline_mode<synchronous>, transform_indices = @transform_1, window_bounds = array<i64: 16, 128>}, {pipeline_mode = #tpu.pipeline_mode<synchronous>, transform_indices = @transform_2, window_bounds = array<i64: 1, 128>}, {pipeline_mode = #tpu.pipeline_mode<synchronous>, transform_indices = @transform_3, window_bounds = array<i64: 1, 128>}, {pipeline_mode = #tpu.pipeline_mode<synchronous>, transform_indices = @transform_4, window_bounds = array<i64: 1, 128>}, {pipeline_mode = #tpu.pipeline_mode<synchronous>, transform_indices = @transform_5, window_bounds = array<i64: 128, 128>}, {pipeline_mode = #tpu.pipeline_mode<synchronous>, transform_indices = @transform_6, window_bounds = array<i64: 1, 128>}, {pipeline_mode = #tpu.pipeline_mode<synchronous>, transform_indices = @transform_7, window_bounds = array<i64: 1, 128>}, {pipeline_mode = #tpu.pipeline_mode<synchronous>, transform_indices = @transform_8, window_bounds = array<i64: 1, 128>}, {pipeline_mode = #tpu.pipeline_mode<synchronous>, transform_indices = @transform_9, window_bounds = array<i64: 128, 8>}, {pipeline_mode = #tpu.pipeline_mode<synchronous>, transform_indices = @transform_10, window_bounds = array<i64: 1, 8>}, {transform_indices = @transform_11, window_bounds = array<i64: 16, 8>}]} {
    %c0 = arith.constant 0 : index
    %c0_0 = arith.constant 0 : index
    %0 = vector.load %arg1[%c0, %c0_0] : memref<16x16xf32, #tpu.memory_space<vmem>>, vector<16x16xf32>
    %c0_1 = arith.constant 0 : index
    %c0_2 = arith.constant 0 : index
    %1 = vector.load %arg2[%c0_1, %c0_2] : memref<16x128xf32, #tpu.memory_space<vmem>>, vector<16x128xf32>
    %cst = arith.constant dense<0.000000e+00> : vector<16x128xf32>
    %2 = tpu.matmul %0, %1, %cst {dimension_numbers = #tpu.dot_dimension_numbers<[1], [0], [0], [1], [0, 0, 1, 1], [], []>} : vector<16x16xf32>, vector<16x128xf32>, vector<16x128xf32> -> vector<16x128xf32>
    %c0_3 = arith.constant 0 : index
    %c0_4 = arith.constant 0 : index
    %3 = vector.load %arg3[%c0_3, %c0_4] : memref<1x128xf32, #tpu.memory_space<vmem>>, vector<1x128xf32>
    %4 = vector.broadcast %3 : vector<1x128xf32> to vector<16x128xf32>
    %5 = arith.addf %2, %4 : vector<16x128xf32>
    %c0_5 = arith.constant 0 : index
    %c0_6 = arith.constant 0 : index
    %6 = vector.load %arg4[%c0_5, %c0_6] : memref<1x128xf32, #tpu.memory_space<vmem>>, vector<1x128xf32>
    %c0_7 = arith.constant 0 : index
    %c0_8 = arith.constant 0 : index
    %7 = vector.load %arg5[%c0_7, %c0_8] : memref<1x128xf32, #tpu.memory_space<vmem>>, vector<1x128xf32>
    %cst_9 = arith.constant dense<0.000000e+00> : vector<16xf32>
    %8 = vector.multi_reduction <add>, %5, %cst_9 [1] : vector<16x128xf32> to vector<16xf32>
    %9 = vector.shape_cast %8 : vector<16xf32> to vector<16x1xf32>
    %cst_10 = arith.constant 0.027777778 : f32
    %10 = vector.broadcast %cst_10 : f32 to vector<16x1xf32>
    %11 = arith.mulf %9, %10 : vector<16x1xf32>
    %12 = vector.broadcast %11 : vector<16x1xf32> to vector<16x128xf32>
    %13 = arith.subf %5, %12 : vector<16x128xf32>
    %14 = arith.mulf %13, %13 : vector<16x128xf32>
    %cst_11 = arith.constant dense<0.000000e+00> : vector<16xf32>
    %15 = vector.multi_reduction <add>, %14, %cst_11 [1] : vector<16x128xf32> to vector<16xf32>
    %16 = vector.shape_cast %15 : vector<16xf32> to vector<16x1xf32>
    %17 = arith.mulf %11, %11 : vector<16x1xf32>
    %cst_12 = arith.constant 9.200000e+01 : f32
    %18 = vector.broadcast %cst_12 : f32 to vector<16x1xf32>
    %19 = arith.mulf %18, %17 : vector<16x1xf32>
    %20 = arith.subf %16, %19 : vector<16x1xf32>
    %cst_13 = arith.constant 0.000000e+00 : f32
    %21 = vector.broadcast %cst_13 : f32 to vector<16x1xf32>
    %22 = arith.maximumf %20, %21 : vector<16x1xf32>
    %cst_14 = arith.constant 0.027777778 : f32
    %23 = vector.broadcast %cst_14 : f32 to vector<16x1xf32>
    %24 = arith.mulf %22, %23 : vector<16x1xf32>
    %cst_15 = arith.constant 9.99999974E-6 : f32
    %25 = vector.broadcast %cst_15 : f32 to vector<16x1xf32>
    %26 = arith.addf %24, %25 : vector<16x1xf32>
    %27 = math.rsqrt %26 : vector<16x1xf32>
    %28 = vector.broadcast %6 : vector<1x128xf32> to vector<16x128xf32>
    %29 = vector.broadcast %27 : vector<16x1xf32> to vector<16x128xf32>
    %30 = arith.mulf %28, %29 : vector<16x128xf32>
    %31 = arith.mulf %5, %30 : vector<16x128xf32>
    %32 = vector.broadcast %11 : vector<16x1xf32> to vector<16x128xf32>
    %33 = arith.mulf %32, %30 : vector<16x128xf32>
    %34 = vector.broadcast %7 : vector<1x128xf32> to vector<16x128xf32>
    %35 = arith.subf %34, %33 : vector<16x128xf32>
    %36 = arith.addf %31, %35 : vector<16x128xf32>
    %cst_16 = arith.constant 0.000000e+00 : f32
    %37 = vector.broadcast %cst_16 : f32 to vector<16x128xf32>
    %38 = arith.maximumf %36, %37 : vector<16x128xf32>
    %c0_17 = arith.constant 0 : index
    %c0_18 = arith.constant 0 : index
    %39 = vector.load %arg6[%c0_17, %c0_18] : memref<128x128xf32, #tpu.memory_space<vmem>>, vector<128x128xf32>
    %cst_19 = arith.constant dense<0.000000e+00> : vector<16x128xf32>
    %40 = tpu.matmul %38, %39, %cst_19 {dimension_numbers = #tpu.dot_dimension_numbers<[1], [0], [0], [1], [0, 0, 1, 1], [], []>} : vector<16x128xf32>, vector<128x128xf32>, vector<16x128xf32> -> vector<16x128xf32>
    %c0_20 = arith.constant 0 : index
    %c0_21 = arith.constant 0 : index
    %41 = vector.load %arg7[%c0_20, %c0_21] : memref<1x128xf32, #tpu.memory_space<vmem>>, vector<1x128xf32>
    %42 = vector.broadcast %41 : vector<1x128xf32> to vector<16x128xf32>
    %43 = arith.addf %40, %42 : vector<16x128xf32>
    %c0_22 = arith.constant 0 : index
    %c0_23 = arith.constant 0 : index
    %44 = vector.load %arg8[%c0_22, %c0_23] : memref<1x128xf32, #tpu.memory_space<vmem>>, vector<1x128xf32>
    %c0_24 = arith.constant 0 : index
    %c0_25 = arith.constant 0 : index
    %45 = vector.load %arg9[%c0_24, %c0_25] : memref<1x128xf32, #tpu.memory_space<vmem>>, vector<1x128xf32>
    %cst_26 = arith.constant dense<0.000000e+00> : vector<16xf32>
    %46 = vector.multi_reduction <add>, %43, %cst_26 [1] : vector<16x128xf32> to vector<16xf32>
    %47 = vector.shape_cast %46 : vector<16xf32> to vector<16x1xf32>
    %cst_27 = arith.constant 0.027777778 : f32
    %48 = vector.broadcast %cst_27 : f32 to vector<16x1xf32>
    %49 = arith.mulf %47, %48 : vector<16x1xf32>
    %50 = vector.broadcast %49 : vector<16x1xf32> to vector<16x128xf32>
    %51 = arith.subf %43, %50 : vector<16x128xf32>
    %52 = arith.mulf %51, %51 : vector<16x128xf32>
    %cst_28 = arith.constant dense<0.000000e+00> : vector<16xf32>
    %53 = vector.multi_reduction <add>, %52, %cst_28 [1] : vector<16x128xf32> to vector<16xf32>
    %54 = vector.shape_cast %53 : vector<16xf32> to vector<16x1xf32>
    %55 = arith.mulf %49, %49 : vector<16x1xf32>
    %cst_29 = arith.constant 9.200000e+01 : f32
    %56 = vector.broadcast %cst_29 : f32 to vector<16x1xf32>
    %57 = arith.mulf %56, %55 : vector<16x1xf32>
    %58 = arith.subf %54, %57 : vector<16x1xf32>
    %cst_30 = arith.constant 0.000000e+00 : f32
    %59 = vector.broadcast %cst_30 : f32 to vector<16x1xf32>
    %60 = arith.maximumf %58, %59 : vector<16x1xf32>
    %cst_31 = arith.constant 0.027777778 : f32
    %61 = vector.broadcast %cst_31 : f32 to vector<16x1xf32>
    %62 = arith.mulf %60, %61 : vector<16x1xf32>
    %cst_32 = arith.constant 9.99999974E-6 : f32
    %63 = vector.broadcast %cst_32 : f32 to vector<16x1xf32>
    %64 = arith.addf %62, %63 : vector<16x1xf32>
    %65 = math.rsqrt %64 : vector<16x1xf32>
    %66 = vector.broadcast %44 : vector<1x128xf32> to vector<16x128xf32>
    %67 = vector.broadcast %65 : vector<16x1xf32> to vector<16x128xf32>
    %68 = arith.mulf %66, %67 : vector<16x128xf32>
    %69 = arith.mulf %43, %68 : vector<16x128xf32>
    %70 = vector.broadcast %49 : vector<16x1xf32> to vector<16x128xf32>
    %71 = arith.mulf %70, %68 : vector<16x128xf32>
    %72 = vector.broadcast %45 : vector<1x128xf32> to vector<16x128xf32>
    %73 = arith.subf %72, %71 : vector<16x128xf32>
    %74 = arith.addf %69, %73 : vector<16x128xf32>
    %cst_33 = arith.constant 0.000000e+00 : f32
    %75 = vector.broadcast %cst_33 : f32 to vector<16x128xf32>
    %76 = arith.maximumf %74, %75 : vector<16x128xf32>
    %c0_34 = arith.constant 0 : index
    %c0_35 = arith.constant 0 : index
    %77 = vector.load %arg10[%c0_34, %c0_35] : memref<128x8xf32, #tpu.memory_space<vmem>>, vector<128x8xf32>
    %cst_36 = arith.constant dense<0.000000e+00> : vector<16x8xf32>
    %78 = tpu.matmul %76, %77, %cst_36 {dimension_numbers = #tpu.dot_dimension_numbers<[1], [0], [0], [1], [0, 0, 1, 1], [], []>} : vector<16x128xf32>, vector<128x8xf32>, vector<16x8xf32> -> vector<16x8xf32>
    %c0_37 = arith.constant 0 : index
    %c0_38 = arith.constant 0 : index
    %79 = vector.load %arg11[%c0_37, %c0_38] : memref<1x8xf32, #tpu.memory_space<vmem>>, vector<1x8xf32>
    %80 = vector.broadcast %79 : vector<1x8xf32> to vector<16x8xf32>
    %81 = arith.addf %78, %80 : vector<16x8xf32>
    %c0_39 = arith.constant 0 : index
    %c0_40 = arith.constant 0 : index
    %82 = vector.load %arg12[%c0_39, %c0_40] : memref<16x8xf32, #tpu.memory_space<vmem>>, vector<16x8xf32>
    tpu.vector_store %arg12[%c0_39, %c0_40], %81 {strides = array<i32>} : memref<16x8xf32, #tpu.memory_space<vmem>>, vector<16x8xf32>,
    return
  }
  func.func @transform_0(%arg0: i32) -> (i32, i32) {
    %c0_i32 = arith.constant 0 : i32
    %c0_i32_0 = arith.constant 0 : i32
    return %arg0, %c0_i32 : i32, i32
  }
  func.func @transform_1(%arg0: i32) -> (i32, i32) {
    %c0_i32 = arith.constant 0 : i32
    %c0_i32_0 = arith.constant 0 : i32
    %c0_i32_1 = arith.constant 0 : i32
    return %c0_i32, %c0_i32_0 : i32, i32
  }
  func.func @transform_2(%arg0: i32) -> (i32, i32) {
    %c0_i32 = arith.constant 0 : i32
    %c0_i32_0 = arith.constant 0 : i32
    %c0_i32_1 = arith.constant 0 : i32
    return %c0_i32, %c0_i32_0 : i32, i32
  }
  func.func @transform_3(%arg0: i32) -> (i32, i32) {
    %c0_i32 = arith.constant 0 : i32
    %c0_i32_0 = arith.constant 0 : i32
    %c0_i32_1 = arith.constant 0 : i32
    return %c0_i32, %c0_i32_0 : i32, i32
  }
  func.func @transform_4(%arg0: i32) -> (i32, i32) {
    %c0_i32 = arith.constant 0 : i32
    %c0_i32_0 = arith.constant 0 : i32
    %c0_i32_1 = arith.constant 0 : i32
    return %c0_i32, %c0_i32_0 : i32, i32
  }
  func.func @transform_5(%arg0: i32) -> (i32, i32) {
    %c0_i32 = arith.constant 0 : i32
    %c0_i32_0 = arith.constant 0 : i32
    %c0_i32_1 = arith.constant 0 : i32
    return %c0_i32, %c0_i32_0 : i32, i32
  }
  func.func @transform_6(%arg0: i32) -> (i32, i32) {
    %c0_i32 = arith.constant 0 : i32
    %c0_i32_0 = arith.constant 0 : i32
    %c0_i32_1 = arith.constant 0 : i32
    return %c0_i32, %c0_i32_0 : i32, i32
  }
  func.func @transform_7(%arg0: i32) -> (i32, i32) {
    %c0_i32 = arith.constant 0 : i32
    %c0_i32_0 = arith.constant 0 : i32
    %c0_i32_1 = arith.constant 0 : i32
    return %c0_i32, %c0_i32_0 : i32, i32
  }
  func.func @transform_8(%arg0: i32) -> (i32, i32) {
    %c0_i32 = arith.constant 0 : i32
    %c0_i32_0 = arith.constant 0 : i32
    %c0_i32_1 = arith.constant 0 : i32
    return %c0_i32, %c0_i32_0 : i32, i32
  }
  func.func @transform_9(%arg0: i32) -> (i32, i32) {
    %c0_i32 = arith.constant 0 : i32
    %c0_i32_0 = arith.constant 0 : i32
    %c0_i32_1 = arith.constant 0 : i32
    return %c0_i32, %c0_i32_0 : i32, i32
  }
  func.func @transform_10(%arg0: i32) -> (i32, i32) {
    %c0_i32 = arith.constant 0 : i32
    %c0_i32_0 = arith.constant 0 : i32
    %c0_i32_1 = arith.constant 0 : i32
    return %c0_i32, %c0_i32_0 : i32, i32
  }
  func.func @transform_11(%arg0: i32) -> (i32, i32) {
    %c0_i32 = arith.constant 0 : i32
    %c0_i32_0 = arith.constant 0 : i32
    return %arg0, %c0_i32 : i32, i32
  }
}

</mosaic_0001>

<llo_original>
// kernel: _policy_repr_forward.1
$region0: #{_policy_repr_forward.1}
  #allocation0 [shape = 'u32[]', space=smem, size = 0x4, offset = 0x4, fixed_abs, tag = 'smem constant byte address 0x4 - core index']
  #allocation1 [shape = 'u32[144,128]{1,0:T(1,128)}', space=vmem, size = 0x12000, scoped, tag = 'internal scratch']
  %s0 = inlined_call_operand.vmem [shape: f32[16,16], index: 0, kind: input, shape index: {}]
  %s1 = inlined_call_operand.hbm [shape: f32[16,128], index: 1, kind: input, shape index: {}]
  %s2 = inlined_call_operand.vmem [shape: f32[1,128], index: 2, kind: input, shape index: {}]
  %s3 = inlined_call_operand.vmem [shape: f32[1,128], index: 3, kind: input, shape index: {}]
  %s4 = inlined_call_operand.vmem [shape: f32[1,128], index: 4, kind: input, shape index: {}]
  %s5 = inlined_call_operand.vmem [shape: f32[128,128], index: 5, kind: input, shape index: {}]
  %s6 = inlined_call_operand.vmem [shape: f32[1,128], index: 6, kind: input, shape index: {}]
  %s7 = inlined_call_operand.vmem [shape: f32[1,128], index: 7, kind: input, shape index: {}]
  %s8 = inlined_call_operand.vmem [shape: f32[1,128], index: 8, kind: input, shape index: {}]
  %s9 = inlined_call_operand.vmem [shape: f32[128,8], index: 9, kind: input, shape index: {}]
  %s10 = inlined_call_operand.vmem [shape: f32[1,8], index: 10, kind: input, shape index: {}]
  %s11 = inlined_call_operand.vmem [shape: f32[16,8], index: 11, kind: output, shape index: {}]
  %s12 = sld [smem:[#allocation0]]
  $region58: #{_policy_repr_forward.1} parent=0
    _
  %s14 = ssub.s32 1, %s12
  %s15 = scalar_select 0, %s14, %s12
  $region1: #{_policy_repr_forward.1} parent=0
    #allocation2 [shape = 'u8[8192]{0}', space=vmem, size = 0x2000, scoped, tag = 'input window, operand 1, single buffered']
    #allocation3 [shape = 's32[1]{0}', space=sflag, size = 0x4, scoped, tag = 'scoped memory for _policy_repr_forward.1']
    %16 = vsyncpa [#allocation3], 0
    // Predicated region
    $region2: #{_policy_repr_forward.1} parent=1 // pred_check
      _
    $region3: #{_policy_repr_forward.1} parent=1 // pred_check_branch
      %18 = sbr.rel (0) target = $region5
    $region4: #{_policy_repr_forward.1} parent=1 // pred_region
      _
    $region5: #{_policy_repr_forward.1} parent=1 // pred_fallthru
      _
    // Predicated region
    $region6: #{_policy_repr_forward.1} parent=1 // pred_check
      _
    $region7: #{_policy_repr_forward.1} parent=1 // pred_check_branch
      %20 = sbr.rel (0) target = $region9
    $region8: #{_policy_repr_forward.1} parent=1 // pred_region
      %s22 = ssub.s32 256, 256
      %23 = vsyncadd [#allocation3], %s22
      %s24 = sshll.u32 [#allocation2], 4
      %s25 = int_to_ptr.vmem [resolvable:$true] %s24
      %30 = dma.hbm_to_vmem [thread:$0]  %s1, 256, %s25, [#allocation3], 128, 128, 8
    $region9: #{_policy_repr_forward.1} parent=1 // pred_fallthru
      _
    // Predicated region
    $region10: #{_policy_repr_forward.1} parent=1 // pred_check
      _
    $region11: #{_policy_repr_forward.1} parent=1 // pred_check_branch
      %32 = sbr.rel (0) target = $region13
    $region12: #{_policy_repr_forward.1} parent=1 // pred_region
      _
    $region13: #{_policy_repr_forward.1} parent=1 // pred_fallthru
      _
    // Predicated region
    $region14: #{_policy_repr_forward.1} parent=1 // pred_check
      _
    $region15: #{_policy_repr_forward.1} parent=1 // pred_check_branch
      %34 = sbr.rel (0) target = $region17
    $region16: #{_policy_repr_forward.1} parent=1 // pred_region
      _
    $region17: #{_policy_repr_forward.1} parent=1 // pred_fallthru
      _
    // Predicated region
    $region18: #{_policy_repr_forward.1} parent=1 // pred_check
      _
    $region19: #{_policy_repr_forward.1} parent=1 // pred_check_branch
      %36 = sbr.rel (0) target = $region21
    $region20: #{_policy_repr_forward.1} parent=1 // pred_region
      _
    $region21: #{_policy_repr_forward.1} parent=1 // pred_fallthru
      _
    // Predicated region
    $region22: #{_policy_repr_forward.1} parent=1 // pred_check
      _
    $region23: #{_policy_repr_forward.1} parent=1 // pred_check_branch
      %38 = sbr.rel (0) target = $region25
    $region24: #{_policy_repr_forward.1} parent=1 // pred_region
      _
    $region25: #{_policy_repr_forward.1} parent=1 // pred_fallthru
      _
    // Predicated region
    $region26: #{_policy_repr_forward.1} parent=1 // pred_check
      _
    $region27: #{_policy_repr_forward.1} parent=1 // pred_check_branch
      %40 = sbr.rel (0) target = $region29
    $region28: #{_policy_repr_forward.1} parent=1 // pred_region
      _
    $region29: #{_policy_repr_forward.1} parent=1 // pred_fallthru
      _
    // Predicated region
    $region30: #{_policy_repr_forward.1} parent=1 // pred_check
      _
    $region31: #{_policy_repr_forward.1} parent=1 // pred_check_branch
      %42 = sbr.rel (0) target = $region33
    $region32: #{_policy_repr_forward.1} parent=1 // pred_region
      _
    $region33: #{_policy_repr_forward.1} parent=1 // pred_fallthru
      _
    // Predicated region
    $region34: #{_policy_repr_forward.1} parent=1 // pred_check
      _
    $region35: #{_policy_repr_forward.1} parent=1 // pred_check_branch
      %44 = sbr.rel (0) target = $region37
    $region36: #{_policy_repr_forward.1} parent=1 // pred_region
      _
    $region37: #{_policy_repr_forward.1} parent=1 // pred_fallthru
      _
    // Predicated region
    $region38: #{_policy_repr_forward.1} parent=1 // pred_check
      _
    $region39: #{_policy_repr_forward.1} parent=1 // pred_check_branch
      %46 = sbr.rel (0) target = $region41
    $region40: #{_policy_repr_forward.1} parent=1 // pred_region
      _
    $region41: #{_policy_repr_forward.1} parent=1 // pred_fallthru
      _
    // Predicated region
    $region42: #{_policy_repr_forward.1} parent=1 // pred_check
      _
    $region43: #{_policy_repr_forward.1} parent=1 // pred_check_branch
      %48 = sbr.rel (0) target = $region45
    $region44: #{_policy_repr_forward.1} parent=1 // pred_region
      _
    $region45: #{_policy_repr_forward.1} parent=1 // pred_fallthru
      _
    // Predicated region
    $region46: #{_policy_repr_forward.1} parent=1 // pred_check
      _
    $region47: #{_policy_repr_forward.1} parent=1 // pred_check_branch
      %50 = sbr.rel (0) target = $region49
    $region48: #{_policy_repr_forward.1} parent=1 // pred_region
      %51 = dma.done [#allocation3], 256
    $region49: #{_policy_repr_forward.1} parent=1 // pred_fallthru
      _
    %v52 = vld [vmem:[%s0] sm:$0xff]
    %v53 = vld [vmem:[%s0 + $0x8] sm:$0xff]
    %v54 = vld [vmem:[#allocation2] sm:$0xff]
    %v55 = vld [vmem:[#allocation2 + $0x8] sm:$0xff]
    %v56 = vld [vmem:[%s2] sm:$0x1]
    %v58 = vlaneseq
    %v59 = vshrl.u32 %v58, 7
    %v60 = vsub.s32 0, %v59
    %v61 = vrot.slane %v56, %v60
    %vm63 = vcmask 130048
    %v65 = vsel %vm63, %v52, 0
    %v68 = vsel %vm63, %v53, 0
    %70 = vmatprep.subr.mxu0 0.0
    %71 = vmatpush1.msra.mxu0 %v54
    %72 = vmatprep.subr.mxu0 0.0
    %73 = vmatpush1.msra.mxu0 %v55
    %74 = vmatprep.subr.mxu0 0.0
    %75 = vmatpush1.msra.mxu0 0.0
    %76 = vmatprep.subr.mxu0 0.0
    %77 = vmatpush1.msra.mxu0 0.0
    %78 = vmatprep.subr.mxu0 0.0
    %79 = vmatpush1.msra.mxu0 0.0
    %80 = vmatprep.subr.mxu0 0.0
    %81 = vmatpush1.msra.mxu0 0.0
    %82 = vmatprep.subr.mxu0 0.0
    %83 = vmatpush1.msra.mxu0 0.0
    %84 = vmatprep.subr.mxu0 0.0
    %85 = vmatpush1.msra.mxu0 0.0
    %86 = vmatprep.subr.mxu0 0.0
    %87 = vmatpush1.msra.mxu0 0.0
    %88 = vmatprep.subr.mxu0 0.0
    %89 = vmatpush1.msra.mxu0 0.0
    %90 = vmatprep.subr.mxu0 0.0
    %91 = vmatpush1.msra.mxu0 0.0
    %92 = vmatprep.subr.mxu0 0.0
    %93 = vmatpush1.msra.mxu0 0.0
    %94 = vmatprep.subr.mxu0 0.0
    %95 = vmatpush1.msra.mxu0 0.0
    %96 = vmatprep.subr.mxu0 0.0
    %97 = vmatpush1.msra.mxu0 0.0
    %98 = vmatprep.subr.mxu0 0.0
    %99 = vmatpush1.msra.mxu0 0.0
    %100 = vmatprep.subr.mxu0 0.0
    %101 = vmatpush1.msra.mxu0 0.0
    %102 = vmatprep.subr.mxu0 0.0
    %103 = vmatpush1.msra.mxu0 0.0
    %104 = vmatprep.subr.mxu0 0.0
    %105 = vmatpush1.msra.mxu0 0.0
    %106 = vmatprep.subr.mxu0 0.0
    %107 = vmatpush1.msra.mxu0 0.0
    %108 = vmatprep.subr.mxu0 0.0
    %109 = vmatpush1.msra.mxu0 0.0
    %110 = vmatprep.subr.mxu0 0.0
    %111 = vmatpush1.msra.mxu0 0.0
    %112 = vmatprep.subr.mxu0 0.0
    %113 = vmatpush1.msra.mxu0 0.0
    %114 = vmatprep.subr.mxu0 0.0
    %115 = vmatpush1.msra.mxu0 0.0
    %116 = vmatprep.subr.mxu0 0.0
    %117 = vmatpush1.msra.mxu0 0.0
    %118 = vmatprep.subr.mxu0 0.0
    %119 = vmatpush1.msra.mxu0 0.0
    %120 = vmatprep.subr.mxu0 0.0
    %121 = vmatpush1.msra.mxu0 0.0
    %122 = vmatprep.subr.mxu0 0.0
    %123 = vmatpush1.msra.mxu0 0.0
    %124 = vmatprep.subr.mxu0 0.0
    %125 = vmatpush1.msra.mxu0 0.0
    %126 = vmatprep.subr.mxu0 0.0
    %127 = vmatpush1.msra.mxu0 0.0
    %128 = vmatprep.subr.mxu0 0.0
    %129 = vmatpush1.msra.mxu0 0.0
    %130 = vmatprep.subr.mxu0 0.0
    %131 = vmatpush1.msra.mxu0 0.0
    %132 = vmatprep.subr.mxu0 0.0
    %133 = vmatpush1.msra.mxu0 0.0
    %134 = vmatprep.mubr.f32.mxu0 0.0
    %135 = vmatmul.mubr.f32.gmra.mrb[0].mxu0 %v65
    %v136 = vpop.f32.mrb[0].mxu0
    %v137 = vadd.f32 %v61, %v136
    %v138 = vpop.f32.mrb[0].mxu0
    %139 = vmatprep.mubr.f32.mxu0 0.0
    %140 = vmatmul.mubr.f32.gmra.mrb[0].mxu0 %v68
    %v141 = vpop.f32.mrb[0].mxu0
    %v142 = vadd.f32 %v61, %v141
    %v143 = vpop.f32.mrb[0].mxu0
    %144 = vdwg.mxu0
    %v145 = vld [vmem:[%s3] sm:$0x1]
    %v146 = vld [vmem:[%s4] sm:$0x1]
    %147 = vadd.xlane.f32.xlu0 %v137
    %v148 = vpop.xlane.xlu0 %147
    %149 = vadd.xlane.f32.xlu0 %v142
    %v150 = vpop.xlane.xlu0 %149
    %v151 = vmul.f32 %v148, 0.027777778
    %v152 = vmul.f32 %v150, 0.027777778
    %v153 = vsub.f32 %v137, %v151
    %v154 = vsub.f32 %v142, %v152
    %v155 = vmul.f32 %v153, %v153
    %v156 = vmul.f32 %v154, %v154
    %157 = vadd.xlane.f32.xlu0 %v155
    %v158 = vpop.xlane.xlu0 %157
    %159 = vadd.xlane.f32.xlu0 %v156
    %v160 = vpop.xlane.xlu0 %159
    %v161 = vmul.f32 %v151, %v151
    %v162 = vmul.f32 %v152, %v152
    %v163 = vmul.f32 %v161, 92.0
    %v164 = vmul.f32 %v162, 92.0
    %v165 = vsub.f32 %v158, %v163
    %v166 = vsub.f32 %v160, %v164
    %v167 = vmax.f32 %v165, 0.0
    %v168 = vmax.f32 %v166, 0.0
    %v169 = vmul.f32 %v167, 0.027777778
    %v170 = vmul.f32 %v168, 0.027777778
    %v171 = vadd.f32 %v169, 1e-05
    %v172 = vadd.f32 %v170, 1e-05
    %v173 = vrsqrt.pop %v171
    %v174 = vrsqrt.pop %v172
    %v176 = vlaneseq
    %v177 = vshrl.u32 %v176, 7
    %v178 = vsub.s32 0, %v177
    %v179 = vrot.slane %v145, %v178
    %v181 = vmul.f32 %v179, %v173
    %v182 = vmul.f32 %v179, %v174
    %v183 = vmul.f32 %v137, %v181
    %v184 = vmul.f32 %v142, %v182
    %v185 = vmul.f32 %v151, %v181
    %v186 = vmul.f32 %v152, %v182
    %v188 = vlaneseq
    %v189 = vshrl.u32 %v188, 7
    %v190 = vsub.s32 0, %v189
    %v191 = vrot.slane %v146, %v190
    %v193 = vsub.f32 %v191, %v185
    %v194 = vsub.f32 %v191, %v186
    %v195 = vadd.f32 %v183, %v193
    %v196 = vadd.f32 %v184, %v194
    %v197 = vmax.f32 %v195, 0.0
    %v198 = vmax.f32 %v196, 0.0
    %v199 = vld [vmem:[%s5] sm:$0xff]
    %v200 = vld [vmem:[%s5 + $0x8] sm:$0xff]
    %v201 = vld [vmem:[%s5 + $0x10] sm:$0xff]
    %v202 = vld [vmem:[%s5 + $0x18] sm:$0xff]
    %v203 = vld [vmem:[%s5 + $0x20] sm:$0xff]
    %v204 = vld [vmem:[%s5 + $0x28] sm:$0xff]
    %v205 = vld [vmem:[%s5 + $0x30] sm:$0xff]
    %v206 = vld [vmem:[%s5 + $0x38] sm:$0xff]
    %v207 = vld [vmem:[%s5 + $0x40] sm:$0xff]
    %v208 = vld [vmem:[%s5 + $0x48] sm:$0xff]
    %v209 = vld [vmem:[%s5 + $0x50] sm:$0xff]
    %v210 = vld [vmem:[%s5 + $0x58] sm:$0xff]
    %v211 = vld [vmem:[%s5 + $0x60] sm:$0xff]
    %v212 = vld [vmem:[%s5 + $0x68] sm:$0xff]
    %v213 = vld [vmem:[%s5 + $0x70] sm:$0xff]
    %v214 = vld [vmem:[%s5 + $0x78] sm:$0xff]
    %v215 = vld [vmem:[%s6] sm:$0x1]
    %v217 = vlaneseq
    %v218 = vshrl.u32 %v217, 7
    %v219 = vsub.s32 0, %v218
    %v220 = vrot.slane %v215, %v219
    %222 = vmatprep.subr.mxu0 0.0
    %223 = vmatpush1.msra.mxu0 %v199
    %224 = vmatprep.subr.mxu0 0.0
    %225 = vmatpush1.msra.mxu0 %v200
    %226 = vmatprep.subr.mxu0 0.0
    %227 = vmatpush1.msra.mxu0 %v201
    %228 = vmatprep.subr.mxu0 0.0
    %229 = vmatpush1.msra.mxu0 %v202
    %230 = vmatprep.subr.mxu0 0.0
    %231 = vmatpush1.msra.mxu0 %v203
    %232 = vmatprep.subr.mxu0 0.0
    %233 = vmatpush1.msra.mxu0 %v204
    %234 = vmatprep.subr.mxu0 0.0
    %235 = vmatpush1.msra.mxu0 %v205
    %236 = vmatprep.subr.mxu0 0.0
    %237 = vmatpush1.msra.mxu0 %v206
    %238 = vmatprep.subr.mxu0 0.0
    %239 = vmatpush1.msra.mxu0 %v207
    %240 = vmatprep.subr.mxu0 0.0
    %241 = vmatpush1.msra.mxu0 %v208
    %242 = vmatprep.subr.mxu0 0.0
    %243 = vmatpush1.msra.mxu0 %v209
    %244 = vmatprep.subr.mxu0 0.0
    %245 = vmatpush1.msra.mxu0 %v210
    %246 = vmatprep.subr.mxu0 0.0
    %247 = vmatpush1.msra.mxu0 %v211
    %248 = vmatprep.subr.mxu0 0.0
    %249 = vmatpush1.msra.mxu0 %v212
    %250 = vmatprep.subr.mxu0 0.0
    %251 = vmatpush1.msra.mxu0 %v213
    %252 = vmatprep.subr.mxu0 0.0
    %253 = vmatpush1.msra.mxu0 %v214
    %254 = vmatprep.subr.mxu0 0.0
    %255 = vmatpush1.msra.mxu0 0.0
    %256 = vmatprep.subr.mxu0 0.0
    %257 = vmatpush1.msra.mxu0 0.0
    %258 = vmatprep.subr.mxu0 0.0
    %259 = vmatpush1.msra.mxu0 0.0
    %260 = vmatprep.subr.mxu0 0.0
    %261 = vmatpush1.msra.mxu0 0.0
    %262 = vmatprep.subr.mxu0 0.0
    %263 = vmatpush1.msra.mxu0 0.0
    %264 = vmatprep.subr.mxu0 0.0
    %265 = vmatpush1.msra.mxu0 0.0
    %266 = vmatprep.subr.mxu0 0.0
    %267 = vmatpush1.msra.mxu0 0.0
    %268 = vmatprep.subr.mxu0 0.0
    %269 = vmatpush1.msra.mxu0 0.0
    %270 = vmatprep.subr.mxu0 0.0
    %271 = vmatpush1.msra.mxu0 0.0
    %272 = vmatprep.subr.mxu0 0.0
    %273 = vmatpush1.msra.mxu0 0.0
    %274 = vmatprep.subr.mxu0 0.0
    %275 = vmatpush1.msra.mxu0 0.0
    %276 = vmatprep.subr.mxu0 0.0
    %277 = vmatpush1.msra.mxu0 0.0
    %278 = vmatprep.subr.mxu0 0.0
    %279 = vmatpush1.msra.mxu0 0.0
    %280 = vmatprep.subr.mxu0 0.0
    %281 = vmatpush1.msra.mxu0 0.0
    %282 = vmatprep.subr.mxu0 0.0
    %283 = vmatpush1.msra.mxu0 0.0
    %284 = vmatprep.subr.mxu0 0.0
    %285 = vmatpush1.msra.mxu0 0.0
    %286 = vmatprep.mubr.f32.mxu0 0.0
    %287 = vmatmul.mubr.f32.gmra.mrb[0].mxu0 %v197
    %v288 = vpop.f32.mrb[0].mxu0
    %v289 = vadd.f32 %v220, %v288
    %v290 = vpop.f32.mrb[0].mxu0
    %291 = vmatprep.mubr.f32.mxu0 0.0
    %292 = vmatmul.mubr.f32.gmra.mrb[0].mxu0 %v198
    %v293 = vpop.f32.mrb[0].mxu0
    %v294 = vadd.f32 %v220, %v293
    %v295 = vpop.f32.mrb[0].mxu0
    %296 = vdwg.mxu0
    %v297 = vld [vmem:[%s7] sm:$0x1]
    %v298 = vld [vmem:[%s8] sm:$0x1]
    %299 = vadd.xlane.f32.xlu0 %v289
    %v300 = vpop.xlane.xlu0 %299
    %301 = vadd.xlane.f32.xlu0 %v294
    %v302 = vpop.xlane.xlu0 %301
    %v303 = vmul.f32 %v300, 0.027777778
    %v304 = vmul.f32 %v302, 0.027777778
    %v305 = vsub.f32 %v289, %v303
    %v306 = vsub.f32 %v294, %v304
    %v307 = vmul.f32 %v305, %v305
    %v308 = vmul.f32 %v306, %v306
    %309 = vadd.xlane.f32.xlu0 %v307
    %v310 = vpop.xlane.xlu0 %309
    %311 = vadd.xlane.f32.xlu0 %v308
    %v312 = vpop.xlane.xlu0 %311
    %v313 = vmul.f32 %v303, %v303
    %v314 = vmul.f32 %v304, %v304
    %v315 = vmul.f32 %v313, 92.0
    %v316 = vmul.f32 %v314, 92.0
    %v317 = vsub.f32 %v310, %v315
    %v318 = vsub.f32 %v312, %v316
    %v319 = vmax.f32 %v317, 0.0
    %v320 = vmax.f32 %v318, 0.0
    %v321 = vmul.f32 %v319, 0.027777778
    %v322 = vmul.f32 %v320, 0.027777778
    %v323 = vadd.f32 %v321, 1e-05
    %v324 = vadd.f32 %v322, 1e-05
    %v325 = vrsqrt.pop %v323
    %v326 = vrsqrt.pop %v324
    %v328 = vlaneseq
    %v329 = vshrl.u32 %v328, 7
    %v330 = vsub.s32 0, %v329
    %v331 = vrot.slane %v297, %v330
    %v333 = vmul.f32 %v331, %v325
    %v334 = vmul.f32 %v331, %v326
    %v335 = vmul.f32 %v289, %v333
    %v336 = vmul.f32 %v294, %v334
    %v337 = vmul.f32 %v303, %v333
    %v338 = vmul.f32 %v304, %v334
    %v340 = vlaneseq
    %v341 = vshrl.u32 %v340, 7
    %v342 = vsub.s32 0, %v341
    %v343 = vrot.slane %v298, %v342
    %v345 = vsub.f32 %v343, %v337
    %v346 = vsub.f32 %v343, %v338
    %v347 = vadd.f32 %v335, %v345
    %v348 = vadd.f32 %v336, %v346
    %v349 = vmax.f32 %v347, 0.0
    %v350 = vmax.f32 %v348, 0.0
    %v351 = vld [vmem:[%s9] sm:$0xff]
    %v352 = vld [vmem:[%s9 + $0x8] sm:$0xff]
    %v353 = vld [vmem:[%s9 + $0x10] sm:$0xff]
    %v354 = vld [vmem:[%s9 + $0x18] sm:$0xff]
    %v355 = vld [vmem:[%s9 + $0x20] sm:$0xff]
    %v356 = vld [vmem:[%s9 + $0x28] sm:$0xff]
    %v357 = vld [vmem:[%s9 + $0x30] sm:$0xff]
    %v358 = vld [vmem:[%s9 + $0x38] sm:$0xff]
    %v359 = vld [vmem:[%s9 + $0x40] sm:$0xff]
    %v360 = vld [vmem:[%s9 + $0x48] sm:$0xff]
    %v361 = vld [vmem:[%s9 + $0x50] sm:$0xff]
    %v362 = vld [vmem:[%s9 + $0x58] sm:$0xff]
    %v363 = vld [vmem:[%s9 + $0x60] sm:$0xff]
    %v364 = vld [vmem:[%s9 + $0x68] sm:$0xff]
    %v365 = vld [vmem:[%s9 + $0x70] sm:$0xff]
    %v366 = vld [vmem:[%s9 + $0x78] sm:$0xff]
    %v367 = vld [vmem:[%s10] sm:$0x1]
    %v369 = vlaneseq
    %v370 = vshrl.u32 %v369, 7
    %v371 = vsub.s32 0, %v370
    %v372 = vrot.slane %v367, %v371
    %374 = vmatprep.subr.mxu0 0.0
    %375 = vmatpush1.msra.mxu0 %v351
    %376 = vmatprep.subr.mxu0 0.0
    %377 = vmatpush1.msra.mxu0 %v352
    %378 = vmatprep.subr.mxu0 0.0
    %379 = vmatpush1.msra.mxu0 %v353
    %380 = vmatprep.subr.mxu0 0.0
    %381 = vmatpush1.msra.mxu0 %v354
    %382 = vmatprep.subr.mxu0 0.0
    %383 = vmatpush1.msra.mxu0 %v355
    %384 = vmatprep.subr.mxu0 0.0
    %385 = vmatpush1.msra.mxu0 %v356
    %386 = vmatprep.subr.mxu0 0.0
    %387 = vmatpush1.msra.mxu0 %v357
    %388 = vmatprep.subr.mxu0 0.0
    %389 = vmatpush1.msra.mxu0 %v358
    %390 = vmatprep.subr.mxu0 0.0
    %391 = vmatpush1.msra.mxu0 %v359
    %392 = vmatprep.subr.mxu0 0.0
    %393 = vmatpush1.msra.mxu0 %v360
    %394 = vmatprep.subr.mxu0 0.0
    %395 = vmatpush1.msra.mxu0 %v361
    %396 = vmatprep.subr.mxu0 0.0
    %397 = vmatpush1.msra.mxu0 %v362
    %398 = vmatprep.subr.mxu0 0.0
    %399 = vmatpush1.msra.mxu0 %v363
    %400 = vmatprep.subr.mxu0 0.0
    %401 = vmatpush1.msra.mxu0 %v364
    %402 = vmatprep.subr.mxu0 0.0
    %403 = vmatpush1.msra.mxu0 %v365
    %404 = vmatprep.subr.mxu0 0.0
    %405 = vmatpush1.msra.mxu0 %v366
    %406 = vmatprep.subr.mxu0 0.0
    %407 = vmatpush1.msra.mxu0 0.0
    %408 = vmatprep.subr.mxu0 0.0
    %409 = vmatpush1.msra.mxu0 0.0
    %410 = vmatprep.subr.mxu0 0.0
    %411 = vmatpush1.msra.mxu0 0.0
    %412 = vmatprep.subr.mxu0 0.0
    %413 = vmatpush1.msra.mxu0 0.0
    %414 = vmatprep.subr.mxu0 0.0
    %415 = vmatpush1.msra.mxu0 0.0
    %416 = vmatprep.subr.mxu0 0.0
    %417 = vmatpush1.msra.mxu0 0.0
    %418 = vmatprep.subr.mxu0 0.0
    %419 = vmatpush1.msra.mxu0 0.0
    %420 = vmatprep.subr.mxu0 0.0
    %421 = vmatpush1.msra.mxu0 0.0
    %422 = vmatprep.subr.mxu0 0.0
    %423 = vmatpush1.msra.mxu0 0.0
    %424 = vmatprep.subr.mxu0 0.0
    %425 = vmatpush1.msra.mxu0 0.0
    %426 = vmatprep.subr.mxu0 0.0
    %427 = vmatpush1.msra.mxu0 0.0
    %428 = vmatprep.subr.mxu0 0.0
    %429 = vmatpush1.msra.mxu0 0.0
    %430 = vmatprep.subr.mxu0 0.0
    %431 = vmatpush1.msra.mxu0 0.0
    %432 = vmatprep.subr.mxu0 0.0
    %433 = vmatpush1.msra.mxu0 0.0
    %434 = vmatprep.subr.mxu0 0.0
    %435 = vmatpush1.msra.mxu0 0.0
    %436 = vmatprep.subr.mxu0 0.0
    %437 = vmatpush1.msra.mxu0 0.0
    %438 = vmatprep.mubr.f32.mxu0 0.0
    %439 = vmatmul.mubr.f32.gmra.mrb[0].mxu0 %v349
    %v440 = vpop.f32.mrb[0].mxu0
    %v441 = vadd.f32 %v372, %v440
    %v442 = vpop.f32.mrb[0].mxu0
    %443 = vmatprep.mubr.f32.mxu0 0.0
    %444 = vmatmul.mubr.f32.gmra.mrb[0].mxu0 %v350
    %v445 = vpop.f32.mrb[0].mxu0
    %v446 = vadd.f32 %v372, %v445
    %v447 = vpop.f32.mrb[0].mxu0
    %448 = vdwg.mxu0
    %vm449 = vcmask 64512
    %450 = vst.msk [vmem:[%s11] sm:$0xff] %vm449, %v441
    %451 = vst.msk [vmem:[%s11 + $0x8] sm:$0xff] %vm449, %v446
    // Predicated region
    $region50: #{_policy_repr_forward.1} parent=1 // pred_check
      _
    $region51: #{_policy_repr_forward.1} parent=1 // pred_check_branch
      %453 = sbr.rel (0) target = $region53
    $region52: #{_policy_repr_forward.1} parent=1 // pred_region
      _
    $region53: #{_policy_repr_forward.1} parent=1 // pred_fallthru
      _
    // Predicated region
    $region54: #{_policy_repr_forward.1} parent=1 // pred_check
      _
    $region55: #{_policy_repr_forward.1} parent=1 // pred_check_branch
      %455 = sbr.rel (0) target = $region57
    $region56: #{_policy_repr_forward.1} parent=1 // pred_region
      _
    $region57: #{_policy_repr_forward.1} parent=1 // pred_fallthru
      _
    %456 = vsyncpa [#allocation3], 1

</llo_original>
